<compile_context>
chip_gen: v7x
topology: tpu7x:2x2x1
jax: 0.10.0
libtpu: 0.0.40
codegen_flags: <defaults>
</compile_context>

<pallas_src>
import functools

import jax
import jax.numpy as jnp
from jax.experimental import pallas as pl
from jax.experimental.pallas import tpu as pltpu

HIDDEN_SIZE = 300          # args.hidden_size (chemprop default)
FFN_HIDDEN = 256           # args.ffn_hidden_size
FFN_HALF = FFN_HIDDEN // 2 # 128
OUTPUT_SIZE = 1            # args.output_size (single-task classification)
BATCH = 8


def _round_up(x, m):
    return (x + m - 1) // m * m


def _molecule_model_kernel(x_ref, w1_ref, w2_ref, p_ref, o_ref):
    """Fused: L2-normalize -> Linear+ReLU -> Linear+ReLU -> Linear(1) -> sigmoid."""
    x = x_ref[...]                                            # [tm, 300] f32

    # F.normalize(x, p=2, dim=1, eps=1e-12):
    #   x / max(||x||, eps) == x * rsqrt(max(||x||^2, eps^2))   (EUP rsqrt)
    sq_norm = jnp.sum(x * x, axis=1, keepdims=True)
    xn = x * jax.lax.rsqrt(jnp.maximum(sq_norm, 1e-24))

    # Packed small parameters (single VMEM input, static lane-aligned slices).
    b1 = p_ref[0:1, :]                                        # [1, 256]
    b2 = p_ref[1:2, 0:FFN_HALF]                               # [1, 128]
    w3 = p_ref[1:2, FFN_HALF:2 * FFN_HALF]                    # [1, 128]
    b3 = p_ref[2:3, 0:1]                                      # [1, 1]

    # ffn layer 1: Linear(300 -> 256) + ReLU   (dropout = identity in eval)
    # bf16 operands straight to the MXU, f32 accumulation.
    h1 = jnp.dot(xn.astype(jnp.bfloat16), w1_ref[...],
                 preferred_element_type=jnp.float32) + b1
    h1 = jnp.maximum(h1, 0.0)

    # ffn layer 2: Linear(256 -> 128) + ReLU
    h2 = jnp.dot(h1.astype(jnp.bfloat16), w2_ref[...],
                 preferred_element_type=jnp.float32) + b2
    h2 = jnp.maximum(h2, 0.0)

    # ffn layer 3: Linear(128 -> 1), emitted lane-dense as a [1, tm] row:
    #   logits[0, m] = sum_k w3[0, k] * h2[m, k]  (contraction over dim 1 of both)
    logits = jax.lax.dot_general(w3, h2, (((1,), (1,)), ((), ())),
                                 preferred_element_type=jnp.float32) + b3

    # classification & not training -> sigmoid
    o_ref[...] = jax.nn.sigmoid(logits).astype(o_ref.dtype)


def prepare_params(w1, b1, w2, b2, w3, b3):
    """One-time host prep: bf16 matmul weights + packed small f32 params."""
    w1p = w1.astype(jnp.bfloat16)                              # [300, 256]
    w2p = w2.astype(jnp.bfloat16)                              # [256, 128]
    small = jnp.zeros((3, FFN_HIDDEN), jnp.float32)
    small = small.at[0, :].set(b1.reshape(-1))                 # b1  -> row 0
    small = small.at[1, :FFN_HALF].set(b2.reshape(-1))         # b2  -> row 1, lanes 0:128
    small = small.at[1, FFN_HALF:].set(w3.reshape(-1))         # w3  -> row 1, lanes 128:256
    small = small.at[2, 0].set(b3.reshape(-1)[0])              # b3  -> row 2, lane 0
    return w1p, w2p, small


@jax.jit
def molecule_model_forward(seq_output, w1p, w2p, small):
    if seq_output.dtype != jnp.float32:
        seq_output = seq_output.astype(jnp.float32)
    b, h = seq_output.shape

    # Batch tiling: single step for small/medium batches; for b > 256 keep at
    # least 2 grid steps (megacore sharding on v7x) and grow the tile up to
    # 1024 rows so the ~0.35 us per-step overhead is amortized.
    if b <= 256:
        tm = _round_up(max(b, 8), 8)
    else:
        tm = min(1024, _round_up(pl.cdiv(b, 2), 8))
    b_pad = _round_up(b, tm)

    # Pad only the batch dim (and only when needed); the feature dim stays at
    # 300 and is read directly (full-dim last block), no host-side copy.
    x_in = seq_output
    if b_pad != b:
        x_in = jnp.pad(seq_output, ((0, b_pad - b), (0, 0)))

    grid = (b_pad // tm,)
    cost = pl.CostEstimate(
        flops=2 * b_pad * (h * FFN_HIDDEN + FFN_HIDDEN * FFN_HALF + FFN_HALF),
        transcendentals=2 * b_pad,                 # rsqrt + sigmoid per row
        bytes_accessed=(b_pad * h * 4
                        + w1p.size * 2 + w2p.size * 2 + small.size * 4
                        + b_pad * 4),
    )

    out = pl.pallas_call(
        _molecule_model_kernel,
        out_shape=jax.ShapeDtypeStruct((b_pad // tm, tm), jnp.float32),
        grid=grid,
        in_specs=[
            pl.BlockSpec((tm, h), lambda i: (i, 0)),                  # x tile (f32)
            pl.BlockSpec((h, FFN_HIDDEN), lambda i: (0, 0)),          # w1 (bf16, resident)
            pl.BlockSpec((FFN_HIDDEN, FFN_HALF), lambda i: (0, 0)),   # w2 (bf16, resident)
            pl.BlockSpec((3, FFN_HIDDEN), lambda i: (0, 0)),          # packed b1/b2/w3/b3
        ],
        out_specs=pl.BlockSpec((1, tm), lambda i: (i, 0)),            # lane-dense row
        compiler_params=pltpu.CompilerParams(
            dimension_semantics=("parallel",),
            vmem_limit_bytes=32 << 20),
        cost_estimate=cost,
    )(x_in, w1p, w2p, small)

    # (grid, tm) -> (b, 1)
    return out.reshape(-1)[:b].reshape(b, OUTPUT_SIZE)


def _init_linear(key, fan_in, fan_out):
    """PyTorch nn.Linear default init: U(-1/sqrt(fan_in), 1/sqrt(fan_in))."""
    kw, kb = jax.random.split(key)
    bound = 1.0 / jnp.sqrt(jnp.float32(fan_in))
    w = jax.random.uniform(kw, (fan_in, fan_out), jnp.float32, -bound, bound)
    b = jax.random.uniform(kb, (1, fan_out), jnp.float32, -bound, bound)
    return w, b


def reference_forward(seq_output, w1p, w2p, small):
    """Pure-JAX reference using the same (bf16-quantized, packed) parameters."""
    x = seq_output.astype(jnp.float32)
    sq = jnp.sum(x * x, axis=1, keepdims=True)
    xn = x * jax.lax.rsqrt(jnp.maximum(sq, 1e-24))
    b1 = small[0:1, :]
    b2 = small[1:2, 0:FFN_HALF]
    w3 = small[1:2, FFN_HALF:2 * FFN_HALF]
    b3 = small[2, 0]
    h1 = jnp.maximum(jnp.dot(xn.astype(jnp.bfloat16), w1p,
                             preferred_element_type=jnp.float32) + b1, 0.0)
    h2 = jnp.maximum(jnp.dot(h1.astype(jnp.bfloat16), w2p,
                             preferred_element_type=jnp.float32) + b2, 0.0)
    logits = jnp.sum(h2 * w3, axis=1, keepdims=True) + b3
    return jax.nn.sigmoid(logits)


if __name__ == "__main__":
    key = jax.random.PRNGKey(0)
    k_x, k1, k2, k3 = jax.random.split(key, 4)

    # seq_output: output of the (external) sequence encoder, shape [B, hidden_size]
    seq_output = jax.random.normal(k_x, (BATCH, HIDDEN_SIZE), jnp.float32)

    w1, b1 = _init_linear(k1, HIDDEN_SIZE, FFN_HIDDEN)
    w2, b2 = _init_linear(k2, FFN_HIDDEN, FFN_HALF)
    w3, b3 = _init_linear(k3, FFN_HALF, OUTPUT_SIZE)

    params = prepare_params(w1, b1, w2, b2, w3, b3)

    out = molecule_model_forward(seq_output, *params)
    out = jax.block_until_ready(out)

    ref = reference_forward(seq_output, *params)
    assert out.shape == (BATCH, OUTPUT_SIZE)
    assert jnp.allclose(out, ref, atol=1e-4, rtol=1e-4)

    # TODO(synk): seq_encoder (MPN/Transformer), the unused nn.GRU, and the
    # multiclass softmax branch are external / not exercised; kernel covers
    # the classification=True, eval-mode path starting from seq_output.
    print("KERNEL_OK")
</pallas_src>

<mosaic_0001>
module attributes {stable_mosaic.version = 11 : i64} {
  func.func @_molecule_model_kernel(%arg0: i32, %arg1: memref<8x300xf32, #tpu.memory_space<vmem>>, %arg2: memref<300x256xbf16, #tpu.memory_space<vmem>>, %arg3: memref<256x128xbf16, #tpu.memory_space<vmem>>, %arg4: memref<3x256xf32, #tpu.memory_space<vmem>>, %arg5: memref<1x8xf32, #tpu.memory_space<vmem>>) attributes {dimension_semantics = [#tpu.dimension_semantics<parallel>], iteration_bounds = array<i64: 1>, scalar_prefetch = 0 : i64, scratch_operands = 0 : i64, tpu.core_type = #tpu.core_type<tc>, window_params = [{transform_indices = @transform_0, window_bounds = array<i64: 8, 300>}, {pipeline_mode = #tpu.pipeline_mode<synchronous>, transform_indices = @transform_1, window_bounds = array<i64: 300, 256>}, {pipeline_mode = #tpu.pipeline_mode<synchronous>, transform_indices = @transform_2, window_bounds = array<i64: 256, 128>}, {pipeline_mode = #tpu.pipeline_mode<synchronous>, transform_indices = @transform_3, window_bounds = array<i64: 3, 256>}, {transform_indices = @transform_4, window_bounds = array<i64: 1, 8>}]} {
    %c0 = arith.constant 0 : index
    %c0_0 = arith.constant 0 : index
    %0 = vector.load %arg1[%c0, %c0_0] : memref<8x300xf32, #tpu.memory_space<vmem>>, vector<8x300xf32>
    %1 = arith.mulf %0, %0 : vector<8x300xf32>
    %cst = arith.constant dense<0.000000e+00> : vector<8xf32>
    %2 = vector.multi_reduction <add>, %1, %cst [1] : vector<8x300xf32> to vector<8xf32>
    %3 = vector.shape_cast %2 : vector<8xf32> to vector<8x1xf32>
    %cst_1 = arith.constant 1.000000e-24 : f32
    %4 = vector.broadcast %cst_1 : f32 to vector<8x1xf32>
    %5 = arith.maximumf %3, %4 : vector<8x1xf32>
    %6 = math.rsqrt %5 : vector<8x1xf32>
    %7 = vector.broadcast %6 : vector<8x1xf32> to vector<8x300xf32>
    %8 = arith.mulf %0, %7 : vector<8x300xf32>
    %c0_2 = arith.constant 0 : index
    %c0_3 = arith.constant 0 : index
    %9 = vector.load %arg4[%c0_2, %c0_3] : memref<3x256xf32, #tpu.memory_space<vmem>>, vector<1x256xf32>
    %c1 = arith.constant 1 : index
    %c0_4 = arith.constant 0 : index
    %10 = vector.load %arg4[%c1, %c0_4] : memref<3x256xf32, #tpu.memory_space<vmem>>, vector<1x128xf32>
    %c1_5 = arith.constant 1 : index
    %c128 = arith.constant 128 : index
    %11 = vector.load %arg4[%c1_5, %c128] : memref<3x256xf32, #tpu.memory_space<vmem>>, vector<1x128xf32>
    %c2 = arith.constant 2 : index
    %c0_6 = arith.constant 0 : index
    %12 = vector.load %arg4[%c2, %c0_6] : memref<3x256xf32, #tpu.memory_space<vmem>>, vector<1x1xf32>
    %13 = arith.truncf %8 : vector<8x300xf32> to vector<8x300xbf16>
    %c0_7 = arith.constant 0 : index
    %c0_8 = arith.constant 0 : index
    %14 = vector.load %arg2[%c0_7, %c0_8] : memref<300x256xbf16, #tpu.memory_space<vmem>>, vector<300x256xbf16>
    %cst_9 = arith.constant dense<0.000000e+00> : vector<8x256xf32>
    %15 = tpu.matmul %13, %14, %cst_9 {dimension_numbers = #tpu.dot_dimension_numbers<[1], [0], [0], [1], [0, 0, 1, 1], [], []>} : vector<8x300xbf16>, vector<300x256xbf16>, vector<8x256xf32> -> vector<8x256xf32>
    %16 = vector.broadcast %9 : vector<1x256xf32> to vector<8x256xf32>
    %17 = arith.addf %15, %16 : vector<8x256xf32>
    %cst_10 = arith.constant 0.000000e+00 : f32
    %18 = vector.broadcast %cst_10 : f32 to vector<8x256xf32>
    %19 = arith.maximumf %17, %18 : vector<8x256xf32>
    %20 = arith.truncf %19 : vector<8x256xf32> to vector<8x256xbf16>
    %c0_11 = arith.constant 0 : index
    %c0_12 = arith.constant 0 : index
    %21 = vector.load %arg3[%c0_11, %c0_12] : memref<256x128xbf16, #tpu.memory_space<vmem>>, vector<256x128xbf16>
    %cst_13 = arith.constant dense<0.000000e+00> : vector<8x128xf32>
    %22 = tpu.matmul %20, %21, %cst_13 {dimension_numbers = #tpu.dot_dimension_numbers<[1], [0], [0], [1], [0, 0, 1, 1], [], []>} : vector<8x256xbf16>, vector<256x128xbf16>, vector<8x128xf32> -> vector<8x128xf32>
    %23 = vector.broadcast %10 : vector<1x128xf32> to vector<8x128xf32>
    %24 = arith.addf %22, %23 : vector<8x128xf32>
    %cst_14 = arith.constant 0.000000e+00 : f32
    %25 = vector.broadcast %cst_14 : f32 to vector<8x128xf32>
    %26 = arith.maximumf %24, %25 : vector<8x128xf32>
    %cst_15 = arith.constant dense<0.000000e+00> : vector<1x8xf32>
    %27 = tpu.matmul %11, %26, %cst_15 {dimension_numbers = #tpu.dot_dimension_numbers<[1], [1], [0], [0], [0, 0, 1, 0], [], []>} : vector<1x128xf32>, vector<8x128xf32>, vector<1x8xf32> -> vector<1x8xf32>
    %28 = vector.broadcast %12 : vector<1x1xf32> to vector<1x8xf32>
    %29 = arith.addf %27, %28 : vector<1x8xf32>
    %30 = arith.negf %29 : vector<1x8xf32>
    %31 = math.exp %30 : vector<1x8xf32>
    %cst_16 = arith.constant 1.000000e+00 : f32
    %32 = vector.broadcast %cst_16 : f32 to vector<1x8xf32>
    %33 = arith.addf %32, %31 : vector<1x8xf32>
    %34 = arith.divf %32, %33 : vector<1x8xf32>
    %c0_17 = arith.constant 0 : index
    %c0_18 = arith.constant 0 : index
    %35 = vector.load %arg5[%c0_17, %c0_18] : memref<1x8xf32, #tpu.memory_space<vmem>>, vector<1x8xf32>
    tpu.vector_store %arg5[%c0_17, %c0_18], %34 {strides = array<i32>} : memref<1x8xf32, #tpu.memory_space<vmem>>, vector<1x8xf32>,
    return
  }
  func.func @transform_0(%arg0: i32) -> (i32, i32) {
    %c0_i32 = arith.constant 0 : i32
    %c0_i32_0 = arith.constant 0 : i32
    return %arg0, %c0_i32 : i32, i32
  }
  func.func @transform_1(%arg0: i32) -> (i32, i32) {
    %c0_i32 = arith.constant 0 : i32
    %c0_i32_0 = arith.constant 0 : i32
    %c0_i32_1 = arith.constant 0 : i32
    return %c0_i32, %c0_i32_0 : i32, i32
  }
  func.func @transform_2(%arg0: i32) -> (i32, i32) {
    %c0_i32 = arith.constant 0 : i32
    %c0_i32_0 = arith.constant 0 : i32
    %c0_i32_1 = arith.constant 0 : i32
    return %c0_i32, %c0_i32_0 : i32, i32
  }
  func.func @transform_3(%arg0: i32) -> (i32, i32) {
    %c0_i32 = arith.constant 0 : i32
    %c0_i32_0 = arith.constant 0 : i32
    %c0_i32_1 = arith.constant 0 : i32
    return %c0_i32, %c0_i32_0 : i32, i32
  }
  func.func @transform_4(%arg0: i32) -> (i32, i32) {
    %c0_i32 = arith.constant 0 : i32
    %c0_i32_0 = arith.constant 0 : i32
    return %arg0, %c0_i32 : i32, i32
  }
}

</mosaic_0001>

<llo_original>
// kernel: molecule_model_forward.1
$region0: #{molecule_model_forward.1}
  #allocation0 [shape = 'u32[]', space=smem, size = 0x4, offset = 0x4, fixed_abs, tag = 'smem constant byte address 0x4 - core index']
  #allocation1 [shape = 'u32[144,128]{1,0:T(1,128)}', space=vmem, size = 0x12000, scoped, tag = 'internal scratch']
  %s0 = inlined_call_operand.hbm [shape: f32[8,300], index: 0, kind: input, shape index: {}]
  %s1 = inlined_call_operand.hbm [shape: bf16[300,256], index: 1, kind: input, shape index: {}]
  %s2 = inlined_call_operand.hbm [shape: bf16[256,128], index: 2, kind: input, shape index: {}]
  %s3 = inlined_call_operand.vmem [shape: f32[3,256], index: 3, kind: input, shape index: {}]
  %s4 = inlined_call_operand.hbm [shape: f32[1,8], index: 4, kind: output, shape index: {}]
  %s5 = sld [smem:[#allocation0]]
  $region38: #{molecule_model_forward.1} parent=0
    _
  %s7 = ssub.s32 1, %s5
  %s8 = scalar_select 0, %s7, %s5
  $region1: #{molecule_model_forward.1} parent=0
    #allocation2 [shape = 'u8[12288]{0}', space=vmem, size = 0x3000, scoped, tag = 'input window, operand 0, single buffered']
    #allocation3 [shape = 's32[1]{0}', space=sflag, size = 0x4, scoped, tag = 'scoped memory for molecule_model_forward.1']
    #allocation4 [shape = 's32[1]{0}', space=sflag, size = 0x4, scoped, tag = 'scoped memory for molecule_model_forward.1']
    #allocation5 [shape = 'u8[155648]{0}', space=vmem, size = 0x26000, scoped, tag = 'input window, operand 1, single buffered']
    #allocation6 [shape = 's32[1]{0}', space=sflag, size = 0x4, scoped, tag = 'scoped memory for molecule_model_forward.1']
    #allocation7 [shape = 'u8[65536]{0}', space=vmem, size = 0x10000, scoped, tag = 'input window, operand 2, single buffered']
    #allocation8 [shape = 'u8[512]{0}', space=vmem, size = 0x400, scoped, tag = 'output window, operand 0, single buffered']
    %9 = vsyncpa [#allocation3], 0
    %10 = vsyncpa [#allocation6], 0
    %11 = vsyncpa [#allocation4], 0
    // Predicated region
    $region2: #{molecule_model_forward.1} parent=1 // pred_check
      _
    $region3: #{molecule_model_forward.1} parent=1 // pred_check_branch
      %13 = sbr.rel (0) target = $region5
    $region4: #{molecule_model_forward.1} parent=1 // pred_region
      %s15 = ssub.s32 384, 384
      %16 = vsyncadd [#allocation3], %s15
      %s18 = sshll.u32 [#allocation2], 4
      %s19 = int_to_ptr.vmem [resolvable:$true] %s18
      %21 = dma.hbm_to_vmem [thread:$0]  %s0, 384, %s19, [#allocation3]
    $region5: #{molecule_model_forward.1} parent=1 // pred_fallthru
      _
    // Predicated region
    $region6: #{molecule_model_forward.1} parent=1 // pred_check
      _
    $region7: #{molecule_model_forward.1} parent=1 // pred_check_branch
      %23 = sbr.rel (0) target = $region9
    $region8: #{molecule_model_forward.1} parent=1 // pred_region
      %s25 = ssub.s32 4864, 4864
      %26 = vsyncadd [#allocation6], %s25
      %s27 = sshll.u32 [#allocation5], 4
      %s28 = int_to_ptr.vmem [resolvable:$true] %s27
      %33 = dma.hbm_to_vmem [thread:$0]  %s1, 4864, %s28, [#allocation6], 128, 128, 8
    $region9: #{molecule_model_forward.1} parent=1 // pred_fallthru
      _
    // Predicated region
    $region10: #{molecule_model_forward.1} parent=1 // pred_check
      _
    $region11: #{molecule_model_forward.1} parent=1 // pred_check_branch
      %35 = sbr.rel (0) target = $region13
    $region12: #{molecule_model_forward.1} parent=1 // pred_region
      %s37 = ssub.s32 2048, 2048
      %38 = vsyncadd [#allocation6], %s37
      %s39 = sshll.u32 [#allocation7], 4
      %s40 = int_to_ptr.vmem [resolvable:$true] %s39
      %45 = dma.hbm_to_vmem [thread:$0]  %s2, 2048, %s40, [#allocation6], 64, 64, 4
    $region13: #{molecule_model_forward.1} parent=1 // pred_fallthru
      _
    // Predicated region
    $region14: #{molecule_model_forward.1} parent=1 // pred_check
      _
    $region15: #{molecule_model_forward.1} parent=1 // pred_check_branch
      %47 = sbr.rel (0) target = $region17
    $region16: #{molecule_model_forward.1} parent=1 // pred_region
      _
    $region17: #{molecule_model_forward.1} parent=1 // pred_fallthru
      _
    // Predicated region
    $region18: #{molecule_model_forward.1} parent=1 // pred_check
      _
    $region19: #{molecule_model_forward.1} parent=1 // pred_check_branch
      %49 = sbr.rel (0) target = $region21
    $region20: #{molecule_model_forward.1} parent=1 // pred_region
      %50 = dma.done [#allocation3], 384
    $region21: #{molecule_model_forward.1} parent=1 // pred_fallthru
      _
    // Predicated region
    $region22: #{molecule_model_forward.1} parent=1 // pred_check
      _
    $region23: #{molecule_model_forward.1} parent=1 // pred_check_branch
      %52 = sbr.rel (0) target = $region25
    $region24: #{molecule_model_forward.1} parent=1 // pred_region
      %53 = dma.done [#allocation6], 4864
    $region25: #{molecule_model_forward.1} parent=1 // pred_fallthru
      _
    // Predicated region
    $region26: #{molecule_model_forward.1} parent=1 // pred_check
      _
    $region27: #{molecule_model_forward.1} parent=1 // pred_check_branch
      %55 = sbr.rel (0) target = $region29
    $region28: #{molecule_model_forward.1} parent=1 // pred_region
      %56 = dma.done [#allocation6], 2048
    $region29: #{molecule_model_forward.1} parent=1 // pred_fallthru
      _
    %v58 = vld [vmem:[#allocation2] sm:$0xff]
    %v59 = vld [vmem:[#allocation2 + $0x8] sm:$0xff]
    %v60 = vld [vmem:[#allocation2 + $0x10] sm:$0xff]
    %v61 = vmul.f32 %v58, %v58
    %v62 = vmul.f32 %v59, %v59
    %v63 = vmul.f32 %v60, %v60
    %v64 = vadd.f32 %v61, %v62
    %vm65 = vcmask 359424
    %v66 = vsel %vm65, %v63, 0.0
    %v67 = vadd.f32 %v64, %v66
    %68 = vadd.xlane.f32.xlu0 %v67
    %v69 = vpop.xlane.xlu0 %68
    %v70 = vmax.f32 %v69, 1e-24
    %v71 = vrsqrt.pop %v70
    %v72 = vmul.f32 %v58, %v71
    %v73 = vmul.f32 %v59, %v71
    %v74 = vmul.f32 %v60, %v71
    %v75 = vld [vmem:[%s3] ss:$4 sm:$0x3]
    %v76 = vld [vmem:[%s3 + $0x1] sm:$0x1]
    %v77 = vld [vmem:[%s3 + $0x5] sm:$0x1]
    %v78 = vld [vmem:[%s3 + $0x2] sm:$0x1]
    %v79 = vpack.c.bf16 %v72, %v72
    %v80 = vpack.c.bf16 %v73, %v73
    %v81 = vpack.c.bf16 %v74, %v74
    %v82 = vld [vmem:[#allocation5] sm:$0xff]
    %v83 = vld [vmem:[#allocation5 + $0x8] sm:$0xff]
    %v84 = vld [vmem:[#allocation5 + $0x10] sm:$0xff]
    %v85 = vld [vmem:[#allocation5 + $0x18] sm:$0xff]
    %v86 = vld [vmem:[#allocation5 + $0x20] sm:$0xff]
    %v87 = vld [vmem:[#allocation5 + $0x28] sm:$0xff]
    %v88 = vld [vmem:[#allocation5 + $0x30] sm:$0xff]
    %v89 = vld [vmem:[#allocation5 + $0x38] sm:$0xff]
    %v90 = vld [vmem:[#allocation5 + $0x40] sm:$0xff]
    %v91 = vld [vmem:[#allocation5 + $0x48] sm:$0xff]
    %v92 = vld [vmem:[#allocation5 + $0x50] sm:$0xff]
    %v93 = vld [vmem:[#allocation5 + $0x58] sm:$0xff]
    %v94 = vld [vmem:[#allocation5 + $0x60] sm:$0xff]
    %v95 = vld [vmem:[#allocation5 + $0x68] sm:$0xff]
    %v96 = vld [vmem:[#allocation5 + $0x70] sm:$0xff]
    %v97 = vld [vmem:[#allocation5 + $0x78] sm:$0xff]
    %v98 = vld [vmem:[#allocation5 + $0x80] sm:$0xff]
    %v99 = vld [vmem:[#allocation5 + $0x88] sm:$0xff]
    %v100 = vld [vmem:[#allocation5 + $0x90] sm:$0xff]
    %v101 = vld [vmem:[#allocation5 + $0x98] sm:$0xff]
    %v102 = vld [vmem:[#allocation5 + $0xa0] sm:$0xff]
    %v103 = vld [vmem:[#allocation5 + $0xa8] sm:$0xff]
    %v104 = vld [vmem:[#allocation5 + $0xb0] sm:$0xff]
    %v105 = vld [vmem:[#allocation5 + $0xb8] sm:$0xff]
    %v106 = vld [vmem:[#allocation5 + $0xc0] sm:$0xff]
    %v107 = vld [vmem:[#allocation5 + $0xc8] sm:$0xff]
    %v108 = vld [vmem:[#allocation5 + $0xd0] sm:$0xff]
    %v109 = vld [vmem:[#allocation5 + $0xd8] sm:$0xff]
    %v110 = vld [vmem:[#allocation5 + $0xe0] sm:$0xff]
    %v111 = vld [vmem:[#allocation5 + $0xe8] sm:$0xff]
    %v112 = vld [vmem:[#allocation5 + $0xf0] sm:$0xff]
    %v113 = vld [vmem:[#allocation5 + $0xf8] sm:$0xff]
    %v114 = vld [vmem:[#allocation5 + $0x100] sm:$0xff]
    %v115 = vld [vmem:[#allocation5 + $0x108] sm:$0xff]
    %v116 = vld [vmem:[#allocation5 + $0x110] sm:$0xff]
    %v117 = vld [vmem:[#allocation5 + $0x118] sm:$0xff]
    %v118 = vld [vmem:[#allocation5 + $0x120] sm:$0xff]
    %v119 = vld [vmem:[#allocation5 + $0x128] sm:$0x33]
    %v121 = vlaneseq
    %v122 = vshrl.u32 %v121, 7
    %v123 = vsub.s32 0, %v122
    %v124 = vrot.slane %v75, %v123
    %v125 = vlaneseq
    %v126 = vshrl.u32 %v125, 7
    %v127 = vsub.s32 1, %v126
    %v128 = vrot.slane %v75, %v127
    %v169 = vunpack.c.l.b16 %v82
    %v170 = vunpack.c.h.b16 %v82
    %v171 = vunpack.c.l.b16 %v83
    %v172 = vunpack.c.h.b16 %v83
    %v173 = vunpack.c.l.b16 %v84
    %v174 = vunpack.c.h.b16 %v84
    %v175 = vunpack.c.l.b16 %v85
    %v176 = vunpack.c.h.b16 %v85
    %v177 = vunpack.c.l.b16 %v86
    %v178 = vunpack.c.h.b16 %v86
    %v179 = vunpack.c.l.b16 %v87
    %v180 = vunpack.c.h.b16 %v87
    %v181 = vunpack.c.l.b16 %v88
    %v182 = vunpack.c.h.b16 %v88
    %v183 = vunpack.c.l.b16 %v89
    %v184 = vunpack.c.h.b16 %v89
    %v185 = vunpack.c.l.b16 %v90
    %v186 = vunpack.c.h.b16 %v90
    %v187 = vunpack.c.l.b16 %v91
    %v188 = vunpack.c.h.b16 %v91
    %v189 = vunpack.c.l.b16 %v92
    %v190 = vunpack.c.h.b16 %v92
    %v191 = vunpack.c.l.b16 %v93
    %v192 = vunpack.c.h.b16 %v93
    %v193 = vunpack.c.l.b16 %v94
    %v194 = vunpack.c.h.b16 %v94
    %v195 = vunpack.c.l.b16 %v95
    %v196 = vunpack.c.h.b16 %v95
    %v197 = vunpack.c.l.b16 %v96
    %v198 = vunpack.c.h.b16 %v96
    %v199 = vunpack.c.l.b16 %v97
    %v200 = vunpack.c.h.b16 %v97
    %v201 = vunpack.c.l.b16 %v98
    %v202 = vunpack.c.h.b16 %v98
    %v203 = vunpack.c.l.b16 %v99
    %v204 = vunpack.c.h.b16 %v99
    %v205 = vunpack.c.l.b16 %v100
    %v206 = vunpack.c.h.b16 %v100
    %v207 = vunpack.c.l.b16 %v101
    %v208 = vunpack.c.h.b16 %v101
    %v209 = vunpack.c.l.b16 %v102
    %v210 = vunpack.c.h.b16 %v102
    %v211 = vunpack.c.l.b16 %v103
    %v212 = vunpack.c.h.b16 %v103
    %v213 = vunpack.c.l.b16 %v104
    %v214 = vunpack.c.h.b16 %v104
    %v215 = vunpack.c.l.b16 %v105
    %v216 = vunpack.c.h.b16 %v105
    %v217 = vunpack.c.l.b16 %v106
    %v218 = vunpack.c.h.b16 %v106
    %v219 = vunpack.c.l.b16 %v107
    %v220 = vunpack.c.h.b16 %v107
    %v221 = vunpack.c.l.b16 %v108
    %v222 = vunpack.c.h.b16 %v108
    %v223 = vunpack.c.l.b16 %v109
    %v224 = vunpack.c.h.b16 %v109
    %v225 = vunpack.c.l.b16 %v110
    %v226 = vunpack.c.h.b16 %v110
    %v227 = vunpack.c.l.b16 %v111
    %v228 = vunpack.c.h.b16 %v111
    %v229 = vunpack.c.l.b16 %v112
    %v230 = vunpack.c.h.b16 %v112
    %v231 = vunpack.c.l.b16 %v113
    %v232 = vunpack.c.h.b16 %v113
    %v233 = vunpack.c.l.b16 %v114
    %v234 = vunpack.c.h.b16 %v114
    %v235 = vunpack.c.l.b16 %v115
    %v236 = vunpack.c.h.b16 %v115
    %v237 = vunpack.c.l.b16 %v116
    %v238 = vunpack.c.h.b16 %v116
    %v239 = vunpack.c.l.b16 %v117
    %v240 = vunpack.c.h.b16 %v117
    %v241 = vunpack.c.l.b16 %v118
    %v242 = vunpack.c.h.b16 %v118
    %v243 = vunpack.c.l.b16 %v119
    %v244 = vunpack.c.h.b16 %v119
    %v245 = vpack.c.b16 %v171, %v169
    %v246 = vpack.c.b16 %v172, %v170
    %v247 = vpack.c.b16 %v175, %v173
    %v248 = vpack.c.b16 %v176, %v174
    %v249 = vpack.c.b16 %v179, %v177
    %v250 = vpack.c.b16 %v180, %v178
    %v251 = vpack.c.b16 %v183, %v181
    %v252 = vpack.c.b16 %v184, %v182
    %v253 = vpack.c.b16 %v187, %v185
    %v254 = vpack.c.b16 %v188, %v186
    %v255 = vpack.c.b16 %v191, %v189
    %v256 = vpack.c.b16 %v192, %v190
    %v257 = vpack.c.b16 %v195, %v193
    %v258 = vpack.c.b16 %v196, %v194
    %v259 = vpack.c.b16 %v199, %v197
    %v260 = vpack.c.b16 %v200, %v198
    %v261 = vpack.c.b16 %v203, %v201
    %v262 = vpack.c.b16 %v204, %v202
    %v263 = vpack.c.b16 %v207, %v205
    %v264 = vpack.c.b16 %v208, %v206
    %v265 = vpack.c.b16 %v211, %v209
    %v266 = vpack.c.b16 %v212, %v210
    %v267 = vpack.c.b16 %v215, %v213
    %v268 = vpack.c.b16 %v216, %v214
    %v269 = vpack.c.b16 %v219, %v217
    %v270 = vpack.c.b16 %v220, %v218
    %v271 = vpack.c.b16 %v223, %v221
    %v272 = vpack.c.b16 %v224, %v222
    %v273 = vpack.c.b16 %v227, %v225
    %v274 = vpack.c.b16 %v228, %v226
    %v275 = vpack.c.b16 %v231, %v229
    %v276 = vpack.c.b16 %v232, %v230
    %v277 = vpack.c.b16 %v235, %v233
    %v278 = vpack.c.b16 %v236, %v234
    %v279 = vpack.c.b16 %v239, %v237
    %v280 = vpack.c.b16 %v240, %v238
    %v281 = vpack.c.b16 %v243, %v241
    %v282 = vpack.c.b16 %v244, %v242
    %v320 = vsel %vm65, %v81, 0
    %vm322 = vcmask 1045504
    %v324 = vsel %vm322, %v281, 0
    %v327 = vsel %vm322, %v282, 0
    %329 = vmatprep.subr.bf16.mxu0 %v246
    %330 = vmatpush1.bf16.msra.mxu0 %v245
    %331 = vmatprep.subr.bf16.mxu0 %v248
    %332 = vmatpush1.bf16.msra.mxu0 %v247
    %333 = vmatprep.subr.bf16.mxu0 %v250
    %334 = vmatpush1.bf16.msra.mxu0 %v249
    %335 = vmatprep.subr.bf16.mxu0 %v252
    %336 = vmatpush1.bf16.msra.mxu0 %v251
    %337 = vmatprep.subr.bf16.mxu0 %v254
    %338 = vmatpush1.bf16.msra.mxu0 %v253
    %339 = vmatprep.subr.bf16.mxu0 %v256
    %340 = vmatpush1.bf16.msra.mxu0 %v255
    %341 = vmatprep.subr.bf16.mxu0 %v258
    %342 = vmatpush1.bf16.msra.mxu0 %v257
    %343 = vmatprep.subr.bf16.mxu0 %v260
    %344 = vmatpush1.bf16.msra.mxu0 %v259
    %345 = vmatprep.subr.bf16.mxu0 %v262
    %346 = vmatpush1.bf16.msra.mxu0 %v261
    %347 = vmatprep.subr.bf16.mxu0 %v264
    %348 = vmatpush1.bf16.msra.mxu0 %v263
    %349 = vmatprep.subr.bf16.mxu0 %v266
    %350 = vmatpush1.bf16.msra.mxu0 %v265
    %351 = vmatprep.subr.bf16.mxu0 %v268
    %352 = vmatpush1.bf16.msra.mxu0 %v267
    %353 = vmatprep.subr.bf16.mxu0 %v270
    %354 = vmatpush1.bf16.msra.mxu0 %v269
    %355 = vmatprep.subr.bf16.mxu0 %v272
    %356 = vmatpush1.bf16.msra.mxu0 %v271
    %357 = vmatprep.subr.bf16.mxu0 %v274
    %358 = vmatpush1.bf16.msra.mxu0 %v273
    %359 = vmatprep.subr.bf16.mxu0 %v276
    %360 = vmatpush1.bf16.msra.mxu0 %v275
    %361 = vmatprep.mubr.bf16.mxu0 %v80
    %362 = vmatmul.mubr.bf16.gmra.mrb[0].mxu0 %v79
    %v363 = vpop.f32.mrb[0].mxu0
    %v364 = vadd.f32 %v124, %v363
    %v365 = vpop.f32.mrb[0].mxu0
    %v366 = vadd.f32 %v128, %v365
    %v367 = vpop.f32.mrb[0].mxu0
    %v368 = vpop.f32.mrb[0].mxu0
    %369 = vdwg.mxu0
    %370 = vmatprep.subr.bf16.mxu0 %v278
    %371 = vmatpush1.bf16.msra.mxu0 %v277
    %372 = vmatprep.subr.bf16.mxu0 %v280
    %373 = vmatpush1.bf16.msra.mxu0 %v279
    %374 = vmatprep.subr.bf16.mxu0 %v327
    %375 = vmatpush1.bf16.msra.mxu0 %v324
    %376 = vmatprep.subr.bf16.mxu0 0
    %377 = vmatpush1.bf16.msra.mxu0 0
    %378 = vmatprep.subr.bf16.mxu0 0
    %379 = vmatpush1.bf16.msra.mxu0 0
    %380 = vmatprep.subr.bf16.mxu0 0
    %381 = vmatpush1.bf16.msra.mxu0 0
    %382 = vmatprep.subr.bf16.mxu0 0
    %383 = vmatpush1.bf16.msra.mxu0 0
    %384 = vmatprep.subr.bf16.mxu0 0
    %385 = vmatpush1.bf16.msra.mxu0 0
    %386 = vmatprep.subr.bf16.mxu0 0
    %387 = vmatpush1.bf16.msra.mxu0 0
    %388 = vmatprep.subr.bf16.mxu0 0
    %389 = vmatpush1.bf16.msra.mxu0 0
    %390 = vmatprep.subr.bf16.mxu0 0
    %391 = vmatpush1.bf16.msra.mxu0 0
    %392 = vmatprep.subr.bf16.mxu0 0
    %393 = vmatpush1.bf16.msra.mxu0 0
    %394 = vmatprep.subr.bf16.mxu0 0
    %395 = vmatpush1.bf16.msra.mxu0 0
    %396 = vmatprep.subr.bf16.mxu0 0
    %397 = vmatpush1.bf16.msra.mxu0 0
    %398 = vmatprep.subr.bf16.mxu0 0
    %399 = vmatpush1.bf16.msra.mxu0 0
    %400 = vmatprep.subr.bf16.mxu0 0
    %401 = vmatpush1.bf16.msra.mxu0 0
    %402 = vmatprep.mubr.bf16.mxu0 0
    %403 = vmatmul.mubr.bf16.gmra.mrb[0].mxu0 %v320
    %v404 = vpop.f32.mrb[0].mxu0
    %v405 = vadd.f32 %v364, %v404
    %v406 = vpop.f32.mrb[0].mxu0
    %v407 = vadd.f32 %v366, %v406
    %v408 = vpop.f32.mrb[0].mxu0
    %v409 = vpop.f32.mrb[0].mxu0
    %410 = vdwg.mxu0
    %v411 = vmax.f32 %v405, 0.0
    %v412 = vmax.f32 %v407, 0.0
    %v413 = vpack.c.bf16 %v411, %v411
    %v414 = vpack.c.bf16 %v412, %v412
    %v415 = vld [vmem:[#allocation7] sm:$0xf]
    %v416 = vld [vmem:[#allocation7 + $0x4] sm:$0xf]
    %v417 = vld [vmem:[#allocation7 + $0x8] sm:$0xf]
    %v418 = vld [vmem:[#allocation7 + $0xc] sm:$0xf]
    %v419 = vld [vmem:[#allocation7 + $0x10] sm:$0xf]
    %v420 = vld [vmem:[#allocation7 + $0x14] sm:$0xf]
    %v421 = vld [vmem:[#allocation7 + $0x18] sm:$0xf]
    %v422 = vld [vmem:[#allocation7 + $0x1c] sm:$0xf]
    %v423 = vld [vmem:[#allocation7 + $0x20] sm:$0xf]
    %v424 = vld [vmem:[#allocation7 + $0x24] sm:$0xf]
    %v425 = vld [vmem:[#allocation7 + $0x28] sm:$0xf]
    %v426 = vld [vmem:[#allocation7 + $0x2c] sm:$0xf]
    %v427 = vld [vmem:[#allocation7 + $0x30] sm:$0xf]
    %v428 = vld [vmem:[#allocation7 + $0x34] sm:$0xf]
    %v429 = vld [vmem:[#allocation7 + $0x38] sm:$0xf]
    %v430 = vld [vmem:[#allocation7 + $0x3c] sm:$0xf]
    %v431 = vld [vmem:[#allocation7 + $0x40] sm:$0xf]
    %v432 = vld [vmem:[#allocation7 + $0x44] sm:$0xf]
    %v433 = vld [vmem:[#allocation7 + $0x48] sm:$0xf]
    %v434 = vld [vmem:[#allocation7 + $0x4c] sm:$0xf]
    %v435 = vld [vmem:[#allocation7 + $0x50] sm:$0xf]
    %v436 = vld [vmem:[#allocation7 + $0x54] sm:$0xf]
    %v437 = vld [vmem:[#allocation7 + $0x58] sm:$0xf]
    %v438 = vld [vmem:[#allocation7 + $0x5c] sm:$0xf]
    %v439 = vld [vmem:[#allocation7 + $0x60] sm:$0xf]
    %v440 = vld [vmem:[#allocation7 + $0x64] sm:$0xf]
    %v441 = vld [vmem:[#allocation7 + $0x68] sm:$0xf]
    %v442 = vld [vmem:[#allocation7 + $0x6c] sm:$0xf]
    %v443 = vld [vmem:[#allocation7 + $0x70] sm:$0xf]
    %v444 = vld [vmem:[#allocation7 + $0x74] sm:$0xf]
    %v445 = vld [vmem:[#allocation7 + $0x78] sm:$0xf]
    %v446 = vld [vmem:[#allocation7 + $0x7c] sm:$0xf]
    %v447 = vlaneseq
    %v448 = vshrl.u32 %v447, 7
    %v449 = vsub.s32 0, %v448
    %v450 = vrot.slane %v76, %v449
    %v483 = vunpack.c.l.b16 %v415
    %v484 = vunpack.c.l.b16 %v416
    %v485 = vunpack.c.l.b16 %v417
    %v486 = vunpack.c.l.b16 %v418
    %v487 = vunpack.c.l.b16 %v419
    %v488 = vunpack.c.l.b16 %v420
    %v489 = vunpack.c.l.b16 %v421
    %v490 = vunpack.c.l.b16 %v422
    %v491 = vunpack.c.l.b16 %v423
    %v492 = vunpack.c.l.b16 %v424
    %v493 = vunpack.c.l.b16 %v425
    %v494 = vunpack.c.l.b16 %v426
    %v495 = vunpack.c.l.b16 %v427
    %v496 = vunpack.c.l.b16 %v428
    %v497 = vunpack.c.l.b16 %v429
    %v498 = vunpack.c.l.b16 %v430
    %v499 = vunpack.c.l.b16 %v431
    %v500 = vunpack.c.l.b16 %v432
    %v501 = vunpack.c.l.b16 %v433
    %v502 = vunpack.c.l.b16 %v434
    %v503 = vunpack.c.l.b16 %v435
    %v504 = vunpack.c.l.b16 %v436
    %v505 = vunpack.c.l.b16 %v437
    %v506 = vunpack.c.l.b16 %v438
    %v507 = vunpack.c.l.b16 %v439
    %v508 = vunpack.c.l.b16 %v440
    %v509 = vunpack.c.l.b16 %v441
    %v510 = vunpack.c.l.b16 %v442
    %v511 = vunpack.c.l.b16 %v443
    %v512 = vunpack.c.l.b16 %v444
    %v513 = vunpack.c.l.b16 %v445
    %v514 = vunpack.c.l.b16 %v446
    %v515 = vpack.c.b16 %v484, %v483
    %v516 = vpack.c.b16 %v486, %v485
    %v517 = vpack.c.b16 %v488, %v487
    %v518 = vpack.c.b16 %v490, %v489
    %v519 = vpack.c.b16 %v492, %v491
    %v520 = vpack.c.b16 %v494, %v493
    %v521 = vpack.c.b16 %v496, %v495
    %v522 = vpack.c.b16 %v498, %v497
    %v523 = vpack.c.b16 %v500, %v499
    %v524 = vpack.c.b16 %v502, %v501
    %v525 = vpack.c.b16 %v504, %v503
    %v526 = vpack.c.b16 %v506, %v505
    %v527 = vpack.c.b16 %v508, %v507
    %v528 = vpack.c.b16 %v510, %v509
    %v529 = vpack.c.b16 %v512, %v511
    %v530 = vpack.c.b16 %v514, %v513
    %547 = vmatprep.subr.bf16.mxu0 0
    %548 = vmatpush1.bf16.msra.mxu0 %v515
    %549 = vmatprep.subr.bf16.mxu0 0
    %550 = vmatpush1.bf16.msra.mxu0 %v516
    %551 = vmatprep.subr.bf16.mxu0 0
    %552 = vmatpush1.bf16.msra.mxu0 %v517
    %553 = vmatprep.subr.bf16.mxu0 0
    %554 = vmatpush1.bf16.msra.mxu0 %v518
    %555 = vmatprep.subr.bf16.mxu0 0
    %556 = vmatpush1.bf16.msra.mxu0 %v519
    %557 = vmatprep.subr.bf16.mxu0 0
    %558 = vmatpush1.bf16.msra.mxu0 %v520
    %559 = vmatprep.subr.bf16.mxu0 0
    %560 = vmatpush1.bf16.msra.mxu0 %v521
    %561 = vmatprep.subr.bf16.mxu0 0
    %562 = vmatpush1.bf16.msra.mxu0 %v522
    %563 = vmatprep.subr.bf16.mxu0 0
    %564 = vmatpush1.bf16.msra.mxu0 %v523
    %565 = vmatprep.subr.bf16.mxu0 0
    %566 = vmatpush1.bf16.msra.mxu0 %v524
    %567 = vmatprep.subr.bf16.mxu0 0
    %568 = vmatpush1.bf16.msra.mxu0 %v525
    %569 = vmatprep.subr.bf16.mxu0 0
    %570 = vmatpush1.bf16.msra.mxu0 %v526
    %571 = vmatprep.subr.bf16.mxu0 0
    %572 = vmatpush1.bf16.msra.mxu0 %v527
    %573 = vmatprep.subr.bf16.mxu0 0
    %574 = vmatpush1.bf16.msra.mxu0 %v528
    %575 = vmatprep.subr.bf16.mxu0 0
    %576 = vmatpush1.bf16.msra.mxu0 %v529
    %577 = vmatprep.subr.bf16.mxu0 0
    %578 = vmatpush1.bf16.msra.mxu0 %v530
    %579 = vmatprep.mubr.bf16.mxu0 %v414
    %580 = vmatmul.mubr.bf16.gmra.mrb[0].mxu0 %v413
    %v581 = vpop.f32.mrb[0].mxu0
    %v582 = vadd.f32 %v450, %v581
    %v583 = vpop.f32.mrb[0].mxu0
    %v584 = vpop.f32.mrb[0].mxu0
    %v585 = vpop.f32.mrb[0].mxu0
    %586 = vdwg.mxu0
    %v587 = vmax.f32 %v582, 0.0
    %589 = vset.pattern.permute.xlu0 0
    %590 = vperm.xlu0 %589, %v78
    %v591 = vpop.permute.xlu0 %590
    %v594 = vunpack.c.l.s4 839922192
    %v595 = vunpack.c.0.s8 %v594
    %v596 = vlaneseq
    %v597 = vshrl.u32 %v596, 7
    %v598 = vsub.s32 %v595, %v597
    %v599 = vrot.slane %v591, %v598
    %600 = vmatprep.subr.mxu0 0.0
    %601 = vmatpush1.xpose.msra.mxu0 %v587
    %602 = vmatprep.subr.mxu0 0.0
    %603 = vmatpush1.xpose.msra.mxu0 0.0
    %604 = vmatprep.subr.mxu0 0.0
    %605 = vmatpush1.xpose.msra.mxu0 0.0
    %606 = vmatprep.subr.mxu0 0.0
    %607 = vmatpush1.xpose.msra.mxu0 0.0
    %608 = vmatprep.subr.mxu0 0.0
    %609 = vmatpush1.xpose.msra.mxu0 0.0
    %610 = vmatprep.subr.mxu0 0.0
    %611 = vmatpush1.xpose.msra.mxu0 0.0
    %612 = vmatprep.subr.mxu0 0.0
    %613 = vmatpush1.xpose.msra.mxu0 0.0
    %614 = vmatprep.subr.mxu0 0.0
    %615 = vmatpush1.xpose.msra.mxu0 0.0
    %616 = vmatprep.subr.mxu0 0.0
    %617 = vmatpush1.xpose.msra.mxu0 0.0
    %618 = vmatprep.subr.mxu0 0.0
    %619 = vmatpush1.xpose.msra.mxu0 0.0
    %620 = vmatprep.subr.mxu0 0.0
    %621 = vmatpush1.xpose.msra.mxu0 0.0
    %622 = vmatprep.subr.mxu0 0.0
    %623 = vmatpush1.xpose.msra.mxu0 0.0
    %624 = vmatprep.subr.mxu0 0.0
    %625 = vmatpush1.xpose.msra.mxu0 0.0
    %626 = vmatprep.subr.mxu0 0.0
    %627 = vmatpush1.xpose.msra.mxu0 0.0
    %628 = vmatprep.subr.mxu0 0.0
    %629 = vmatpush1.xpose.msra.mxu0 0.0
    %630 = vmatprep.subr.mxu0 0.0
    %631 = vmatpush1.xpose.msra.mxu0 0.0
    %632 = vmatprep.subr.mxu0 0.0
    %633 = vmatpush1.xpose.msra.mxu0 0.0
    %634 = vmatprep.subr.mxu0 0.0
    %635 = vmatpush1.xpose.msra.mxu0 0.0
    %636 = vmatprep.subr.mxu0 0.0
    %637 = vmatpush1.xpose.msra.mxu0 0.0
    %638 = vmatprep.subr.mxu0 0.0
    %639 = vmatpush1.xpose.msra.mxu0 0.0
    %640 = vmatprep.subr.mxu0 0.0
    %641 = vmatpush1.xpose.msra.mxu0 0.0
    %642 = vmatprep.subr.mxu0 0.0
    %643 = vmatpush1.xpose.msra.mxu0 0.0
    %644 = vmatprep.subr.mxu0 0.0
    %645 = vmatpush1.xpose.msra.mxu0 0.0
    %646 = vmatprep.subr.mxu0 0.0
    %647 = vmatpush1.xpose.msra.mxu0 0.0
    %648 = vmatprep.subr.mxu0 0.0
    %649 = vmatpush1.xpose.msra.mxu0 0.0
    %650 = vmatprep.subr.mxu0 0.0
    %651 = vmatpush1.xpose.msra.mxu0 0.0
    %652 = vmatprep.subr.mxu0 0.0
    %653 = vmatpush1.xpose.msra.mxu0 0.0
    %654 = vmatprep.subr.mxu0 0.0
    %655 = vmatpush1.xpose.msra.mxu0 0.0
    %656 = vmatprep.subr.mxu0 0.0
    %657 = vmatpush1.xpose.msra.mxu0 0.0
    %658 = vmatprep.subr.mxu0 0.0
    %659 = vmatpush1.xpose.msra.mxu0 0.0
    %660 = vmatprep.subr.mxu0 0.0
    %661 = vmatpush1.xpose.msra.mxu0 0.0
    %662 = vmatprep.subr.mxu0 0.0
    %663 = vmatpush1.xpose.msra.mxu0 0.0
    %664 = vmatprep.mubr.f32.mxu0 0.0
    %665 = vmatmul.mubr.f32.gmra.mrb[0].mxu0 %v77
    %v666 = vpop.f32.mrb[0].mxu0
    %v667 = vadd.f32 %v599, %v666
    %v668 = vpop.f32.mrb[0].mxu0
    %669 = vdwg.mxu0
    %v670 = vxor.u32 %v667, 2147483648
    %v671 = vmul.f32 %v670, 1.442695
    %v672 = vpow.pop %v671
    %v673 = vadd.f32 %v672, 1.0
    %v674 = vrcp.pop %v673
    %v675 = vmul.f32 1.0, %v674
    %vm676 = vcmask 57344
    %677 = vst.msk [vmem:[#allocation8] sm:$0x1] %vm676, %v675
    // Predicated region
    $region30: #{molecule_model_forward.1} parent=1 // pred_check
      _
    $region31: #{molecule_model_forward.1} parent=1 // pred_check_branch
      %679 = sbr.rel (0) target = $region33
    $region32: #{molecule_model_forward.1} parent=1 // pred_region
      %s681 = ssub.s32 16, 16
      %682 = vsyncadd [#allocation4], %s681
      %s684 = sshll.u32 [#allocation8], 4
      %s685 = int_to_ptr.vmem [resolvable:$true] %s684
      %687 = dma.vmem_to_hbm [thread:$0]  %s685, 16, %s4, [#allocation4]
    $region33: #{molecule_model_forward.1} parent=1 // pred_fallthru
      _
    // Predicated region
    $region34: #{molecule_model_forward.1} parent=1 // pred_check
      _
    $region35: #{molecule_model_forward.1} parent=1 // pred_check_branch
      %689 = sbr.rel (0) target = $region37
    $region36: #{molecule_model_forward.1} parent=1 // pred_region
      %690 = dma.done [#allocation4], 16
    $region37: #{molecule_model_forward.1} parent=1 // pred_fallthru
      _
    %691 = vsyncpa [#allocation3], 1
    %692 = vsyncpa [#allocation6], 1
    %693 = vsyncpa [#allocation4], 1

</llo_original>
